<compile_context>
chip_gen: v7x
topology: tpu7x:2x2x1
jax: 0.10.0
libtpu: 0.0.40
codegen_flags: <defaults>
</compile_context>

<pallas_src>
import jax
import jax.numpy as jnp
from jax.experimental import pallas as pl
from jax.experimental.pallas import tpu as pltpu

INPUT = 64            # LSTM input size
H = 100               # LSTM hidden size (logical)
HP = 128              # hidden padded to a full 128-lane block
OUT = 10              # fc output size (logical)
OUTP = 128            # fc output padded to a full 128-lane block
NGATES = 3            # i, g, o (forget gate pruned: c0 == 0 => f*c0 == 0)
GW = 2 * NGATES * HP  # fused fwd+bwd gate width = 768


def rnn_kernel(x_ref, w1_ref, b1_ref, w2_ref, b2_ref, wfc_ref, bfc_ref, o_ref):
    """One batch tile of the 2-layer bidirectional LSTM (seq_len==1) + head."""

    def gate_sigmoid(pre):
        # i/o pre-activations were pre-scaled by 0.5 on the host (folded into
        # weights/biases), so sigmoid(x) == 0.5*tanh(x/2)+0.5 reduces to one
        # tanh (EUP slot) + a single FMA (VPU). Pad lanes: tanh(0)*0.5+0.5=0.5,
        # cancelled below because the g-gate pad is exactly 0.
        return 0.5 * jnp.tanh(pre) + 0.5

    def bi_lstm_cell(inp_bf16, w_ref, b_ref):
        # Fused fwd+bwd single-timestep cell. Column layout of w / b:
        #   [ i_fwd | i_bwd | g_fwd | g_bwd | o_fwd | o_bwd ], 128 lanes each.
        # h0 = c0 = 0: hidden->hidden matmul dropped, b_hh folded into b,
        # forget gate pruned. Accumulation + gate math stay f32.
        gates = jnp.dot(inp_bf16, w_ref[...],
                        preferred_element_type=jnp.float32) + b_ref[...]
        i = gate_sigmoid(gates[:, 0 * HP:2 * HP])
        g = jnp.tanh(gates[:, 2 * HP:4 * HP])
        o = gate_sigmoid(gates[:, 4 * HP:6 * HP])
        # (Bt, 2*HP): cols [0:128) = h_fwd (padded), [128:256) = h_bwd
        # (padded) — already the concatenated layer output. Pad lanes are
        # exactly 0 (zero weight cols / bias => 0.5 * tanh(0.5 * 0) = 0).
        return o * jnp.tanh(i * g)

    x = x_ref[...]                                          # (Bt, 64)  bf16
    l1 = bi_lstm_cell(x, w1_ref, b1_ref)                    # (Bt, 256) f32
    l2 = bi_lstm_cell(l1.astype(jnp.bfloat16), w2_ref, b2_ref)
    a = jnp.tanh(l2).astype(jnp.bfloat16)                   # tanh -> fc
    y = jnp.dot(a, wfc_ref[...],
                preferred_element_type=jnp.float32) + bfc_ref[...]
    o_ref[...] = jnp.tanh(y).astype(o_ref.dtype)            # (Bt, 128) bf16


def _round_up(n, m):
    return ((n + m - 1) // m) * m


def rnn_forward(x, params, block_b=512):
    """x: (B, 64) float. Returns (B, 10) float32 == RNN().eval()(x)."""
    B = x.shape[0]
    # Batch tile: multiple of 16 (bf16 sublane packing). Cap it so the batch
    # grid has >= 2 steps whenever B allows it — with
    # dimension_semantics=("parallel",) v7x then shards steps over both TCs.
    half = _round_up(pl.cdiv(_round_up(B, 16), 2), 16)
    Bt = max(16, min(block_b, half))
    Bp = _round_up(B, Bt)

    xp = x.astype(jnp.bfloat16)
    if Bp != B:
        xp = jnp.pad(xp, ((0, Bp - B), (0, 0)))

    w1, b1 = params["w1"], params["b1"]
    w2, b2 = params["w2"], params["b2"]
    wfc, bfc = params["wfc"], params["bfc"]

    # Weights/biases use constant index_maps => VMEM-resident across the
    # batch grid; only the x / output tiles stream.
    def const(shape):
        return pl.BlockSpec(shape, lambda b: (0,) * len(shape))

    compiler_kwargs = dict(dimension_semantics=("parallel",))
    if Bt >= 2048:
        # Only needed for extreme batch tiles: intermediates (gates (Bt,768)
        # f32, l1/l2, double-buffered x/out) then exceed the 32 MiB scoped
        # default; stay under v7x's 64 MiB physical VMEM.
        compiler_kwargs["vmem_limit_bytes"] = 64 * 1024 * 1024

    out = pl.pallas_call(
        rnn_kernel,
        out_shape=jax.ShapeDtypeStruct((Bp, OUTP), jnp.bfloat16),
        grid=(Bp // Bt,),
        in_specs=[
            pl.BlockSpec((Bt, INPUT), lambda b: (b, 0)),
            const(w1.shape), const(b1.shape),
            const(w2.shape), const(b2.shape),
            const(wfc.shape), const(bfc.shape),
        ],
        out_specs=pl.BlockSpec((Bt, OUTP), lambda b: (b, 0)),
        compiler_params=pltpu.CompilerParams(**compiler_kwargs),
    )(xp, w1, b1, w2, b2, wfc, bfc)
    return out[:B, :OUT].astype(jnp.float32)


def init_params(key):
    """Synthetic PyTorch-style init (U(-1/sqrt(fan), 1/sqrt(fan))), repacked
    host-side into the fused / forget-pruned / 128-padded / sigmoid-prescaled
    bf16 layout."""
    lstm_bound = 1.0 / jnp.sqrt(jnp.float32(H))
    fc_bound = 1.0 / jnp.sqrt(jnp.float32(2 * H))
    keys = iter(jax.random.split(key, 16))

    def u(shape, bound):
        return jax.random.uniform(next(keys), shape, jnp.float32, -bound, bound)

    # Per (layer, direction): weight stored transposed (in_features, 4H) with
    # PyTorch gate order [i, f, g, o]; bias = b_ih + b_hh already folded.
    def raw(in_dim):
        w = u((in_dim, 4 * H), lstm_bound)
        b = u((1, 4 * H), lstm_bound) + u((1, 4 * H), lstm_bound)
        return w, b

    w1f, b1f = raw(INPUT)
    w1b, b1b = raw(INPUT)
    w2f, b2f = raw(2 * H)
    w2b, b2b = raw(2 * H)
    wfc = u((2 * H, OUT), fc_bound)
    bfc = u((1, OUT), fc_bound)

    def pad_rows(m):
        # (2H, n) -> (2HP, n): fwd-h rows at [0:H), bwd-h rows at [HP:HP+H),
        # zeros at the pad rows (matches the kernel's padded layer output).
        out = jnp.zeros((2 * HP, m.shape[1]), m.dtype)
        return out.at[:H].set(m[:H]).at[HP:HP + H].set(m[H:])

    def pack_layer(wf, bf, wb, bb):
        # -> (in_dim, 6*HP) / (1, 6*HP), columns
        #    [ i_fwd | i_bwd | g_fwd | g_bwd | o_fwd | o_bwd ]; forget pruned.
        # i/o gate columns pre-scaled by 0.5 so the kernel's sigmoid is a
        # single tanh + FMA. Pad columns / pad bias lanes stay exactly zero
        # (required for padded-lane correctness).
        in_dim = wf.shape[0]
        w = jnp.zeros((in_dim, GW), jnp.float32)
        b = jnp.zeros((1, GW), jnp.float32)
        for blk, (src_w, src_b, gate, scale) in enumerate([
                (wf, bf, 0, 0.5), (wb, bb, 0, 0.5),     # i (pre-scaled)
                (wf, bf, 2, 1.0), (wb, bb, 2, 1.0),     # g
                (wf, bf, 3, 0.5), (wb, bb, 3, 0.5)]):   # o (pre-scaled)
            w = w.at[:, blk * HP:blk * HP + H].set(
                scale * src_w[:, gate * H:(gate + 1) * H])
            b = b.at[:, blk * HP:blk * HP + H].set(
                scale * src_b[:, gate * H:(gate + 1) * H])
        return w, b

    w1, b1 = pack_layer(w1f, b1f, w1b, b1b)                       # (64, 768)
    w2, b2 = pack_layer(pad_rows(w2f), b2f, pad_rows(w2b), b2b)   # (256, 768)
    wfc_p = jnp.zeros((2 * HP, OUTP), jnp.float32).at[:, :OUT].set(pad_rows(wfc))
    bfc_p = jnp.zeros((1, OUTP), jnp.float32).at[:, :OUT].set(bfc)

    # bf16 matmul operands (weights); biases stay f32 (added to f32 accum).
    # TODO(synk): bf16 weights + bf16 output store differ from an f32 PyTorch
    # reference by ~1e-2 relative worst case; compare with rtol/atol ~ 2e-2/1e-2.
    return {
        "w1": w1.astype(jnp.bfloat16), "b1": b1,
        "w2": w2.astype(jnp.bfloat16), "b2": b2,
        "wfc": wfc_p.astype(jnp.bfloat16), "bfc": bfc_p,
    }


if __name__ == "__main__":
    key = jax.random.PRNGKey(0)
    kx, kp = jax.random.split(key)
    B = 8
    x = jax.random.normal(kx, (B, INPUT), jnp.float32)
    params = init_params(kp)

    out = jax.block_until_ready(rnn_forward(x, params))
    assert out.shape == (B, OUT), out.shape
    assert bool(jnp.all(jnp.isfinite(out)))
    print("KERNEL_OK")
</pallas_src>

<mosaic_0001>
module attributes {stable_mosaic.version = 11 : i64} {
  func.func @rnn_kernel(%arg0: i32, %arg1: memref<16x64xbf16, #tpu.memory_space<vmem>>, %arg2: memref<64x768xbf16, #tpu.memory_space<vmem>>, %arg3: memref<1x768xf32, #tpu.memory_space<vmem>>, %arg4: memref<256x768xbf16, #tpu.memory_space<vmem>>, %arg5: memref<1x768xf32, #tpu.memory_space<vmem>>, %arg6: memref<256x128xbf16, #tpu.memory_space<vmem>>, %arg7: memref<1x128xf32, #tpu.memory_space<vmem>>, %arg8: memref<16x128xbf16, #tpu.memory_space<vmem>>) attributes {dimension_semantics = [#tpu.dimension_semantics<parallel>], iteration_bounds = array<i64: 1>, scalar_prefetch = 0 : i64, scratch_operands = 0 : i64, tpu.core_type = #tpu.core_type<tc>, window_params = [{transform_indices = @transform_0, window_bounds = array<i64: 16, 64>}, {pipeline_mode = #tpu.pipeline_mode<synchronous>, transform_indices = @transform_1, window_bounds = array<i64: 64, 768>}, {pipeline_mode = #tpu.pipeline_mode<synchronous>, transform_indices = @transform_2, window_bounds = array<i64: 1, 768>}, {pipeline_mode = #tpu.pipeline_mode<synchronous>, transform_indices = @transform_3, window_bounds = array<i64: 256, 768>}, {pipeline_mode = #tpu.pipeline_mode<synchronous>, transform_indices = @transform_4, window_bounds = array<i64: 1, 768>}, {pipeline_mode = #tpu.pipeline_mode<synchronous>, transform_indices = @transform_5, window_bounds = array<i64: 256, 128>}, {pipeline_mode = #tpu.pipeline_mode<synchronous>, transform_indices = @transform_6, window_bounds = array<i64: 1, 128>}, {transform_indices = @transform_7, window_bounds = array<i64: 16, 128>}]} {
    %c0 = arith.constant 0 : index
    %c0_0 = arith.constant 0 : index
    %0 = vector.load %arg1[%c0, %c0_0] : memref<16x64xbf16, #tpu.memory_space<vmem>>, vector<16x64xbf16>
    %c0_1 = arith.constant 0 : index
    %c0_2 = arith.constant 0 : index
    %1 = vector.load %arg2[%c0_1, %c0_2] : memref<64x768xbf16, #tpu.memory_space<vmem>>, vector<64x768xbf16>
    %cst = arith.constant dense<0.000000e+00> : vector<16x768xf32>
    %2 = tpu.matmul %0, %1, %cst {dimension_numbers = #tpu.dot_dimension_numbers<[1], [0], [0], [1], [0, 0, 1, 1], [], []>} : vector<16x64xbf16>, vector<64x768xbf16>, vector<16x768xf32> -> vector<16x768xf32>
    %c0_3 = arith.constant 0 : index
    %c0_4 = arith.constant 0 : index
    %3 = vector.load %arg3[%c0_3, %c0_4] : memref<1x768xf32, #tpu.memory_space<vmem>>, vector<1x768xf32>
    %4 = vector.broadcast %3 : vector<1x768xf32> to vector<16x768xf32>
    %5 = arith.addf %2, %4 : vector<16x768xf32>
    %6 = vector.extract_strided_slice %5 {offsets = [0, 0], sizes = [16, 256], strides = [1, 1]} : vector<16x768xf32> to vector<16x256xf32>
    %7 = math.tanh %6 : vector<16x256xf32>
    %cst_5 = arith.constant 5.000000e-01 : f32
    %8 = vector.broadcast %cst_5 : f32 to vector<16x256xf32>
    %9 = arith.mulf %8, %7 : vector<16x256xf32>
    %cst_6 = arith.constant 5.000000e-01 : f32
    %10 = vector.broadcast %cst_6 : f32 to vector<16x256xf32>
    %11 = arith.addf %9, %10 : vector<16x256xf32>
    %12 = vector.extract_strided_slice %5 {offsets = [0, 256], sizes = [16, 256], strides = [1, 1]} : vector<16x768xf32> to vector<16x256xf32>
    %13 = math.tanh %12 : vector<16x256xf32>
    %14 = vector.extract_strided_slice %5 {offsets = [0, 512], sizes = [16, 256], strides = [1, 1]} : vector<16x768xf32> to vector<16x256xf32>
    %15 = math.tanh %14 : vector<16x256xf32>
    %cst_7 = arith.constant 5.000000e-01 : f32
    %16 = vector.broadcast %cst_7 : f32 to vector<16x256xf32>
    %17 = arith.mulf %16, %15 : vector<16x256xf32>
    %cst_8 = arith.constant 5.000000e-01 : f32
    %18 = vector.broadcast %cst_8 : f32 to vector<16x256xf32>
    %19 = arith.addf %17, %18 : vector<16x256xf32>
    %20 = arith.mulf %11, %13 : vector<16x256xf32>
    %21 = math.tanh %20 : vector<16x256xf32>
    %22 = arith.mulf %19, %21 : vector<16x256xf32>
    %23 = arith.truncf %22 : vector<16x256xf32> to vector<16x256xbf16>
    %c0_9 = arith.constant 0 : index
    %c0_10 = arith.constant 0 : index
    %24 = vector.load %arg4[%c0_9, %c0_10] : memref<256x768xbf16, #tpu.memory_space<vmem>>, vector<256x768xbf16>
    %cst_11 = arith.constant dense<0.000000e+00> : vector<16x768xf32>
    %25 = tpu.matmul %23, %24, %cst_11 {dimension_numbers = #tpu.dot_dimension_numbers<[1], [0], [0], [1], [0, 0, 1, 1], [], []>} : vector<16x256xbf16>, vector<256x768xbf16>, vector<16x768xf32> -> vector<16x768xf32>
    %c0_12 = arith.constant 0 : index
    %c0_13 = arith.constant 0 : index
    %26 = vector.load %arg5[%c0_12, %c0_13] : memref<1x768xf32, #tpu.memory_space<vmem>>, vector<1x768xf32>
    %27 = vector.broadcast %26 : vector<1x768xf32> to vector<16x768xf32>
    %28 = arith.addf %25, %27 : vector<16x768xf32>
    %29 = vector.extract_strided_slice %28 {offsets = [0, 0], sizes = [16, 256], strides = [1, 1]} : vector<16x768xf32> to vector<16x256xf32>
    %30 = math.tanh %29 : vector<16x256xf32>
    %cst_14 = arith.constant 5.000000e-01 : f32
    %31 = vector.broadcast %cst_14 : f32 to vector<16x256xf32>
    %32 = arith.mulf %31, %30 : vector<16x256xf32>
    %cst_15 = arith.constant 5.000000e-01 : f32
    %33 = vector.broadcast %cst_15 : f32 to vector<16x256xf32>
    %34 = arith.addf %32, %33 : vector<16x256xf32>
    %35 = vector.extract_strided_slice %28 {offsets = [0, 256], sizes = [16, 256], strides = [1, 1]} : vector<16x768xf32> to vector<16x256xf32>
    %36 = math.tanh %35 : vector<16x256xf32>
    %37 = vector.extract_strided_slice %28 {offsets = [0, 512], sizes = [16, 256], strides = [1, 1]} : vector<16x768xf32> to vector<16x256xf32>
    %38 = math.tanh %37 : vector<16x256xf32>
    %cst_16 = arith.constant 5.000000e-01 : f32
    %39 = vector.broadcast %cst_16 : f32 to vector<16x256xf32>
    %40 = arith.mulf %39, %38 : vector<16x256xf32>
    %cst_17 = arith.constant 5.000000e-01 : f32
    %41 = vector.broadcast %cst_17 : f32 to vector<16x256xf32>
    %42 = arith.addf %40, %41 : vector<16x256xf32>
    %43 = arith.mulf %34, %36 : vector<16x256xf32>
    %44 = math.tanh %43 : vector<16x256xf32>
    %45 = arith.mulf %42, %44 : vector<16x256xf32>
    %46 = math.tanh %45 : vector<16x256xf32>
    %47 = arith.truncf %46 : vector<16x256xf32> to vector<16x256xbf16>
    %c0_18 = arith.constant 0 : index
    %c0_19 = arith.constant 0 : index
    %48 = vector.load %arg6[%c0_18, %c0_19] : memref<256x128xbf16, #tpu.memory_space<vmem>>, vector<256x128xbf16>
    %cst_20 = arith.constant dense<0.000000e+00> : vector<16x128xf32>
    %49 = tpu.matmul %47, %48, %cst_20 {dimension_numbers = #tpu.dot_dimension_numbers<[1], [0], [0], [1], [0, 0, 1, 1], [], []>} : vector<16x256xbf16>, vector<256x128xbf16>, vector<16x128xf32> -> vector<16x128xf32>
    %c0_21 = arith.constant 0 : index
    %c0_22 = arith.constant 0 : index
    %50 = vector.load %arg7[%c0_21, %c0_22] : memref<1x128xf32, #tpu.memory_space<vmem>>, vector<1x128xf32>
    %51 = vector.broadcast %50 : vector<1x128xf32> to vector<16x128xf32>
    %52 = arith.addf %49, %51 : vector<16x128xf32>
    %53 = math.tanh %52 : vector<16x128xf32>
    %54 = arith.truncf %53 : vector<16x128xf32> to vector<16x128xbf16>
    %c0_23 = arith.constant 0 : index
    %c0_24 = arith.constant 0 : index
    %55 = vector.load %arg8[%c0_23, %c0_24] : memref<16x128xbf16, #tpu.memory_space<vmem>>, vector<16x128xbf16>
    tpu.vector_store %arg8[%c0_23, %c0_24], %54 {strides = array<i32>} : memref<16x128xbf16, #tpu.memory_space<vmem>>, vector<16x128xbf16>,
    return
  }
  func.func @transform_0(%arg0: i32) -> (i32, i32) {
    %c0_i32 = arith.constant 0 : i32
    %c0_i32_0 = arith.constant 0 : i32
    return %arg0, %c0_i32 : i32, i32
  }
  func.func @transform_1(%arg0: i32) -> (i32, i32) {
    %c0_i32 = arith.constant 0 : i32
    %c0_i32_0 = arith.constant 0 : i32
    %c0_i32_1 = arith.constant 0 : i32
    return %c0_i32, %c0_i32_0 : i32, i32
  }
  func.func @transform_2(%arg0: i32) -> (i32, i32) {
    %c0_i32 = arith.constant 0 : i32
    %c0_i32_0 = arith.constant 0 : i32
    %c0_i32_1 = arith.constant 0 : i32
    return %c0_i32, %c0_i32_0 : i32, i32
  }
  func.func @transform_3(%arg0: i32) -> (i32, i32) {
    %c0_i32 = arith.constant 0 : i32
    %c0_i32_0 = arith.constant 0 : i32
    %c0_i32_1 = arith.constant 0 : i32
    return %c0_i32, %c0_i32_0 : i32, i32
  }
  func.func @transform_4(%arg0: i32) -> (i32, i32) {
    %c0_i32 = arith.constant 0 : i32
    %c0_i32_0 = arith.constant 0 : i32
    %c0_i32_1 = arith.constant 0 : i32
    return %c0_i32, %c0_i32_0 : i32, i32
  }
  func.func @transform_5(%arg0: i32) -> (i32, i32) {
    %c0_i32 = arith.constant 0 : i32
    %c0_i32_0 = arith.constant 0 : i32
    %c0_i32_1 = arith.constant 0 : i32
    return %c0_i32, %c0_i32_0 : i32, i32
  }
  func.func @transform_6(%arg0: i32) -> (i32, i32) {
    %c0_i32 = arith.constant 0 : i32
    %c0_i32_0 = arith.constant 0 : i32
    %c0_i32_1 = arith.constant 0 : i32
    return %c0_i32, %c0_i32_0 : i32, i32
  }
  func.func @transform_7(%arg0: i32) -> (i32, i32) {
    %c0_i32 = arith.constant 0 : i32
    %c0_i32_0 = arith.constant 0 : i32
    return %arg0, %c0_i32 : i32, i32
  }
}

</mosaic_0001>

<llo_original>
// kernel: tpu_custom_call.1
$region0: #{tpu_custom_call.1}
  #allocation0 [shape = 'u32[]', space=smem, size = 0x4, offset = 0x4, fixed_abs, tag = 'smem constant byte address 0x4 - core index']
  #allocation1 [shape = 'u32[144,128]{1,0:T(1,128)}', space=vmem, size = 0x12000, scoped, tag = 'internal scratch']
  %s0 = inlined_call_operand.hbm [shape: bf16[16,64], index: 0, kind: input, shape index: {}]
  %s1 = inlined_call_operand.hbm [shape: bf16[64,768], index: 1, kind: input, shape index: {}]
  %s2 = inlined_call_operand.vmem [shape: f32[1,768], index: 2, kind: input, shape index: {}]
  %s3 = inlined_call_operand.hbm [shape: bf16[256,768], index: 3, kind: input, shape index: {}]
  %s4 = inlined_call_operand.vmem [shape: f32[1,768], index: 4, kind: input, shape index: {}]
  %s5 = inlined_call_operand.hbm [shape: bf16[256,128], index: 5, kind: input, shape index: {}]
  %s6 = inlined_call_operand.vmem [shape: f32[1,128], index: 6, kind: input, shape index: {}]
  %s7 = inlined_call_operand.hbm [shape: bf16[16,128], index: 7, kind: output, shape index: {}]
  %s8 = sld [smem:[#allocation0]]
  $region54: #{tpu_custom_call.1} parent=0
    _
  %s10 = ssub.s32 1, %s8
  %s11 = scalar_select 0, %s10, %s8
  $region1: #{tpu_custom_call.1} parent=0
    #allocation2 [shape = 'u8[4096]{0}', space=vmem, size = 0x1000, scoped, tag = 'input window, operand 0, single buffered']
    #allocation3 [shape = 's32[1]{0}', space=sflag, size = 0x4, scoped, tag = 'scoped memory for tpu_custom_call.1']
    #allocation4 [shape = 's32[1]{0}', space=sflag, size = 0x4, scoped, tag = 'scoped memory for tpu_custom_call.1']
    #allocation5 [shape = 'u8[98304]{0}', space=vmem, size = 0x18000, scoped, tag = 'input window, operand 1, single buffered']
    #allocation6 [shape = 's32[1]{0}', space=sflag, size = 0x4, scoped, tag = 'scoped memory for tpu_custom_call.1']
    #allocation7 [shape = 'u8[393216]{0}', space=vmem, size = 0x60000, scoped, tag = 'input window, operand 3, single buffered']
    #allocation8 [shape = 'u8[65536]{0}', space=vmem, size = 0x10000, scoped, tag = 'input window, operand 5, single buffered']
    #allocation9 [shape = 's32[1]{0}', space=sflag, size = 0x4, scoped, tag = 'scoped memory for tpu_custom_call.1']
    #allocation10 [shape = 'u8[4096]{0}', space=vmem, size = 0x1000, scoped, tag = 'output window, operand 0, single buffered']
    %12 = vsyncpa [#allocation3], 0
    %13 = vsyncpa [#allocation6], 0
    %14 = vsyncpa [#allocation9], 0
    %15 = vsyncpa [#allocation4], 0
    // Predicated region
    $region2: #{tpu_custom_call.1} parent=1 // pred_check
      _
    $region3: #{tpu_custom_call.1} parent=1 // pred_check_branch
      %17 = sbr.rel (0) target = $region5
    $region4: #{tpu_custom_call.1} parent=1 // pred_region
      %s19 = ssub.s32 128, 128
      %20 = vsyncadd [#allocation3], %s19
      %s21 = sshll.u32 [#allocation2], 4
      %s22 = int_to_ptr.vmem [resolvable:$true] %s21
      %27 = dma.hbm_to_vmem [thread:$0]  %s0, 128, %s22, [#allocation3], 64, 64, 4
    $region5: #{tpu_custom_call.1} parent=1 // pred_fallthru
      _
    // Predicated region
    $region6: #{tpu_custom_call.1} parent=1 // pred_check
      _
    $region7: #{tpu_custom_call.1} parent=1 // pred_check_branch
      %29 = sbr.rel (0) target = $region9
    $region8: #{tpu_custom_call.1} parent=1 // pred_region
      %s31 = ssub.s32 3072, 3072
      %32 = vsyncadd [#allocation6], %s31
      %s33 = sshll.u32 [#allocation5], 4
      %s34 = int_to_ptr.vmem [resolvable:$true] %s33
      %39 = dma.hbm_to_vmem [thread:$0]  %s1, 3072, %s34, [#allocation6], 384, 384, 24
    $region9: #{tpu_custom_call.1} parent=1 // pred_fallthru
      _
    // Predicated region
    $region10: #{tpu_custom_call.1} parent=1 // pred_check
      _
    $region11: #{tpu_custom_call.1} parent=1 // pred_check_branch
      %41 = sbr.rel (0) target = $region13
    $region12: #{tpu_custom_call.1} parent=1 // pred_region
      _
    $region13: #{tpu_custom_call.1} parent=1 // pred_fallthru
      _
    // Predicated region
    $region14: #{tpu_custom_call.1} parent=1 // pred_check
      _
    $region15: #{tpu_custom_call.1} parent=1 // pred_check_branch
      %43 = sbr.rel (0) target = $region17
    $region16: #{tpu_custom_call.1} parent=1 // pred_region
      %s45 = ssub.s32 12288, 12288
      %46 = vsyncadd [#allocation6], %s45
      %s47 = sshll.u32 [#allocation7], 4
      %s48 = int_to_ptr.vmem [resolvable:$true] %s47
      %53 = dma.hbm_to_vmem [thread:$0]  %s3, 12288, %s48, [#allocation6], 384, 384, 24
    $region17: #{tpu_custom_call.1} parent=1 // pred_fallthru
      _
    // Predicated region
    $region18: #{tpu_custom_call.1} parent=1 // pred_check
      _
    $region19: #{tpu_custom_call.1} parent=1 // pred_check_branch
      %55 = sbr.rel (0) target = $region21
    $region20: #{tpu_custom_call.1} parent=1 // pred_region
      _
    $region21: #{tpu_custom_call.1} parent=1 // pred_fallthru
      _
    // Predicated region
    $region22: #{tpu_custom_call.1} parent=1 // pred_check
      _
    $region23: #{tpu_custom_call.1} parent=1 // pred_check_branch
      %57 = sbr.rel (0) target = $region25
    $region24: #{tpu_custom_call.1} parent=1 // pred_region
      %s59 = ssub.s32 2048, 2048
      %60 = vsyncadd [#allocation9], %s59
      %s61 = sshll.u32 [#allocation8], 4
      %s62 = int_to_ptr.vmem [resolvable:$true] %s61
      %67 = dma.hbm_to_vmem [thread:$0]  %s5, 2048, %s62, [#allocation9], 64, 64, 4
    $region25: #{tpu_custom_call.1} parent=1 // pred_fallthru
      _
    // Predicated region
    $region26: #{tpu_custom_call.1} parent=1 // pred_check
      _
    $region27: #{tpu_custom_call.1} parent=1 // pred_check_branch
      %69 = sbr.rel (0) target = $region29
    $region28: #{tpu_custom_call.1} parent=1 // pred_region
      _
    $region29: #{tpu_custom_call.1} parent=1 // pred_fallthru
      _
    // Predicated region
    $region30: #{tpu_custom_call.1} parent=1 // pred_check
      _
    $region31: #{tpu_custom_call.1} parent=1 // pred_check_branch
      %71 = sbr.rel (0) target = $region33
    $region32: #{tpu_custom_call.1} parent=1 // pred_region
      %72 = dma.done [#allocation3], 128
    $region33: #{tpu_custom_call.1} parent=1 // pred_fallthru
      _
    // Predicated region
    $region34: #{tpu_custom_call.1} parent=1 // pred_check
      _
    $region35: #{tpu_custom_call.1} parent=1 // pred_check_branch
      %74 = sbr.rel (0) target = $region37
    $region36: #{tpu_custom_call.1} parent=1 // pred_region
      %75 = dma.done [#allocation6], 3072
    $region37: #{tpu_custom_call.1} parent=1 // pred_fallthru
      _
    // Predicated region
    $region38: #{tpu_custom_call.1} parent=1 // pred_check
      _
    $region39: #{tpu_custom_call.1} parent=1 // pred_check_branch
      %77 = sbr.rel (0) target = $region41
    $region40: #{tpu_custom_call.1} parent=1 // pred_region
      %78 = dma.done [#allocation6], 12288
    $region41: #{tpu_custom_call.1} parent=1 // pred_fallthru
      _
    // Predicated region
    $region42: #{tpu_custom_call.1} parent=1 // pred_check
      _
    $region43: #{tpu_custom_call.1} parent=1 // pred_check_branch
      %80 = sbr.rel (0) target = $region45
    $region44: #{tpu_custom_call.1} parent=1 // pred_region
      %81 = dma.done [#allocation9], 2048
    $region45: #{tpu_custom_call.1} parent=1 // pred_fallthru
      _
    %v83 = vld [vmem:[#allocation2] sm:$0xf]
    %v84 = vld [vmem:[#allocation2 + $0x4] sm:$0xf]
    %v85 = vld [vmem:[#allocation5] sm:$0xff]
    %v86 = vld [vmem:[#allocation5 + $0x8] sm:$0xff]
    %v87 = vld [vmem:[#allocation5 + $0x10] sm:$0xff]
    %v88 = vld [vmem:[#allocation5 + $0x18] sm:$0xff]
    %v89 = vld [vmem:[#allocation5 + $0x20] sm:$0xff]
    %v90 = vld [vmem:[#allocation5 + $0x28] sm:$0xff]
    %v91 = vld [vmem:[#allocation5 + $0x30] sm:$0xff]
    %v92 = vld [vmem:[#allocation5 + $0x38] sm:$0xff]
    %v93 = vld [vmem:[#allocation5 + $0x40] sm:$0xff]
    %v94 = vld [vmem:[#allocation5 + $0x48] sm:$0xff]
    %v95 = vld [vmem:[#allocation5 + $0x50] sm:$0xff]
    %v96 = vld [vmem:[#allocation5 + $0x58] sm:$0xff]
    %v97 = vld [vmem:[#allocation5 + $0x60] sm:$0xff]
    %v98 = vld [vmem:[#allocation5 + $0x68] sm:$0xff]
    %v99 = vld [vmem:[#allocation5 + $0x70] sm:$0xff]
    %v100 = vld [vmem:[#allocation5 + $0x78] sm:$0xff]
    %v101 = vld [vmem:[#allocation5 + $0x80] sm:$0xff]
    %v102 = vld [vmem:[#allocation5 + $0x88] sm:$0xff]
    %v103 = vld [vmem:[#allocation5 + $0x90] sm:$0xff]
    %v104 = vld [vmem:[#allocation5 + $0x98] sm:$0xff]
    %v105 = vld [vmem:[#allocation5 + $0xa0] sm:$0xff]
    %v106 = vld [vmem:[#allocation5 + $0xa8] sm:$0xff]
    %v107 = vld [vmem:[#allocation5 + $0xb0] sm:$0xff]
    %v108 = vld [vmem:[#allocation5 + $0xb8] sm:$0xff]
    %v109 = vld [vmem:[%s2] sm:$0x3f]
    %v111 = vlaneseq
    %v112 = vshrl.u32 %v111, 7
    %v113 = vsub.s32 0, %v112
    %v114 = vrot.slane %v109, %v113
    %v115 = vlaneseq
    %v116 = vshrl.u32 %v115, 7
    %v117 = vsub.s32 1, %v116
    %v118 = vrot.slane %v109, %v117
    %v119 = vlaneseq
    %v120 = vshrl.u32 %v119, 7
    %v121 = vsub.s32 2, %v120
    %v122 = vrot.slane %v109, %v121
    %v123 = vlaneseq
    %v124 = vshrl.u32 %v123, 7
    %v125 = vsub.s32 3, %v124
    %v126 = vrot.slane %v109, %v125
    %v127 = vlaneseq
    %v128 = vshrl.u32 %v127, 7
    %v129 = vsub.s32 4, %v128
    %v130 = vrot.slane %v109, %v129
    %v131 = vlaneseq
    %v132 = vshrl.u32 %v131, 7
    %v133 = vsub.s32 5, %v132
    %v134 = vrot.slane %v109, %v133
    %v143 = vunpack.c.l.b16 %v83
    %v144 = vunpack.c.l.b16 %v84
    %v145 = vpack.c.b16 %v144, %v143
    %v170 = vunpack.c.l.b16 %v85
    %v171 = vunpack.c.h.b16 %v85
    %v172 = vunpack.c.l.b16 %v86
    %v173 = vunpack.c.h.b16 %v86
    %v174 = vunpack.c.l.b16 %v87
    %v175 = vunpack.c.h.b16 %v87
    %v176 = vunpack.c.l.b16 %v88
    %v177 = vunpack.c.h.b16 %v88
    %v178 = vunpack.c.l.b16 %v89
    %v179 = vunpack.c.h.b16 %v89
    %v180 = vunpack.c.l.b16 %v90
    %v181 = vunpack.c.h.b16 %v90
    %v182 = vunpack.c.l.b16 %v91
    %v183 = vunpack.c.h.b16 %v91
    %v184 = vunpack.c.l.b16 %v92
    %v185 = vunpack.c.h.b16 %v92
    %v186 = vunpack.c.l.b16 %v93
    %v187 = vunpack.c.h.b16 %v93
    %v188 = vunpack.c.l.b16 %v94
    %v189 = vunpack.c.h.b16 %v94
    %v190 = vunpack.c.l.b16 %v95
    %v191 = vunpack.c.h.b16 %v95
    %v192 = vunpack.c.l.b16 %v96
    %v193 = vunpack.c.h.b16 %v96
    %v194 = vunpack.c.l.b16 %v97
    %v195 = vunpack.c.h.b16 %v97
    %v196 = vunpack.c.l.b16 %v98
    %v197 = vunpack.c.h.b16 %v98
    %v198 = vunpack.c.l.b16 %v99
    %v199 = vunpack.c.h.b16 %v99
    %v200 = vunpack.c.l.b16 %v100
    %v201 = vunpack.c.h.b16 %v100
    %v202 = vunpack.c.l.b16 %v101
    %v203 = vunpack.c.h.b16 %v101
    %v204 = vunpack.c.l.b16 %v102
    %v205 = vunpack.c.h.b16 %v102
    %v206 = vunpack.c.l.b16 %v103
    %v207 = vunpack.c.h.b16 %v103
    %v208 = vunpack.c.l.b16 %v104
    %v209 = vunpack.c.h.b16 %v104
    %v210 = vunpack.c.l.b16 %v105
    %v211 = vunpack.c.h.b16 %v105
    %v212 = vunpack.c.l.b16 %v106
    %v213 = vunpack.c.h.b16 %v106
    %v214 = vunpack.c.l.b16 %v107
    %v215 = vunpack.c.h.b16 %v107
    %v216 = vunpack.c.l.b16 %v108
    %v217 = vunpack.c.h.b16 %v108
    %v218 = vpack.c.b16 %v176, %v170
    %v219 = vpack.c.b16 %v177, %v171
    %v220 = vpack.c.b16 %v178, %v172
    %v221 = vpack.c.b16 %v179, %v173
    %v222 = vpack.c.b16 %v180, %v174
    %v223 = vpack.c.b16 %v181, %v175
    %v224 = vpack.c.b16 %v188, %v182
    %v225 = vpack.c.b16 %v189, %v183
    %v226 = vpack.c.b16 %v190, %v184
    %v227 = vpack.c.b16 %v191, %v185
    %v228 = vpack.c.b16 %v192, %v186
    %v229 = vpack.c.b16 %v193, %v187
    %v230 = vpack.c.b16 %v200, %v194
    %v231 = vpack.c.b16 %v201, %v195
    %v232 = vpack.c.b16 %v202, %v196
    %v233 = vpack.c.b16 %v203, %v197
    %v234 = vpack.c.b16 %v204, %v198
    %v235 = vpack.c.b16 %v205, %v199
    %v236 = vpack.c.b16 %v212, %v206
    %v237 = vpack.c.b16 %v213, %v207
    %v238 = vpack.c.b16 %v214, %v208
    %v239 = vpack.c.b16 %v215, %v209
    %v240 = vpack.c.b16 %v216, %v210
    %v241 = vpack.c.b16 %v217, %v211
    %vm266 = vcmask 523264
    %v268 = vsel %vm266, %v145, 0
    %270 = vmatprep.subr.bf16.mxu0 %v219
    %271 = vmatpush1.bf16.msra.mxu0 %v218
    %272 = vmatprep.subr.bf16.mxu0 %v225
    %273 = vmatpush1.bf16.msra.mxu0 %v224
    %274 = vmatprep.subr.bf16.mxu0 %v231
    %275 = vmatpush1.bf16.msra.mxu0 %v230
    %276 = vmatprep.subr.bf16.mxu0 %v237
    %277 = vmatpush1.bf16.msra.mxu0 %v236
    %278 = vmatprep.subr.bf16.mxu0 0
    %279 = vmatpush1.bf16.msra.mxu0 0
    %280 = vmatprep.subr.bf16.mxu0 0
    %281 = vmatpush1.bf16.msra.mxu0 0
    %282 = vmatprep.subr.bf16.mxu0 0
    %283 = vmatpush1.bf16.msra.mxu0 0
    %284 = vmatprep.subr.bf16.mxu0 0
    %285 = vmatpush1.bf16.msra.mxu0 0
    %286 = vmatprep.subr.bf16.mxu0 0
    %287 = vmatpush1.bf16.msra.mxu0 0
    %288 = vmatprep.subr.bf16.mxu0 0
    %289 = vmatpush1.bf16.msra.mxu0 0
    %290 = vmatprep.subr.bf16.mxu0 0
    %291 = vmatpush1.bf16.msra.mxu0 0
    %292 = vmatprep.subr.bf16.mxu0 0
    %293 = vmatpush1.bf16.msra.mxu0 0
    %294 = vmatprep.subr.bf16.mxu0 0
    %295 = vmatpush1.bf16.msra.mxu0 0
    %296 = vmatprep.subr.bf16.mxu0 0
    %297 = vmatpush1.bf16.msra.mxu0 0
    %298 = vmatprep.subr.bf16.mxu0 0
    %299 = vmatpush1.bf16.msra.mxu0 0
    %300 = vmatprep.subr.bf16.mxu0 0
    %301 = vmatpush1.bf16.msra.mxu0 0
    %302 = vmatprep.mubr.bf16.mxu0 0
    %303 = vmatmul.mubr.bf16.gmra.mrb[0].mxu0 %v268
    %v304 = vpop.f32.mrb[0].mxu0
    %v305 = vadd.f32 %v114, %v304
    %v306 = vpop.f32.mrb[0].mxu0
    %v307 = vadd.f32 %v118, %v306
    %v308 = vpop.f32.mrb[0].mxu0
    %v309 = vadd.f32 %v114, %v308
    %v310 = vpop.f32.mrb[0].mxu0
    %v311 = vadd.f32 %v118, %v310
    %312 = vdwg.mxu0
    %313 = vmatprep.subr.bf16.mxu0 %v221
    %314 = vmatpush1.bf16.msra.mxu0 %v220
    %315 = vmatprep.subr.bf16.mxu0 %v227
    %316 = vmatpush1.bf16.msra.mxu0 %v226
    %317 = vmatprep.subr.bf16.mxu0 %v233
    %318 = vmatpush1.bf16.msra.mxu0 %v232
    %319 = vmatprep.subr.bf16.mxu0 %v239
    %320 = vmatpush1.bf16.msra.mxu0 %v238
    %321 = vmatprep.subr.bf16.mxu0 0
    %322 = vmatpush1.bf16.msra.mxu0 0
    %323 = vmatprep.subr.bf16.mxu0 0
    %324 = vmatpush1.bf16.msra.mxu0 0
    %325 = vmatprep.subr.bf16.mxu0 0
    %326 = vmatpush1.bf16.msra.mxu0 0
    %327 = vmatprep.subr.bf16.mxu0 0
    %328 = vmatpush1.bf16.msra.mxu0 0
    %329 = vmatprep.subr.bf16.mxu0 0
    %330 = vmatpush1.bf16.msra.mxu0 0
    %331 = vmatprep.subr.bf16.mxu0 0
    %332 = vmatpush1.bf16.msra.mxu0 0
    %333 = vmatprep.subr.bf16.mxu0 0
    %334 = vmatpush1.bf16.msra.mxu0 0
    %335 = vmatprep.subr.bf16.mxu0 0
    %336 = vmatpush1.bf16.msra.mxu0 0
    %337 = vmatprep.subr.bf16.mxu0 0
    %338 = vmatpush1.bf16.msra.mxu0 0
    %339 = vmatprep.subr.bf16.mxu0 0
    %340 = vmatpush1.bf16.msra.mxu0 0
    %341 = vmatprep.subr.bf16.mxu0 0
    %342 = vmatpush1.bf16.msra.mxu0 0
    %343 = vmatprep.subr.bf16.mxu0 0
    %344 = vmatpush1.bf16.msra.mxu0 0
    %345 = vmatprep.mubr.bf16.mxu0 0
    %346 = vmatmul.mubr.bf16.gmra.mrb[0].mxu0 %v268
    %v347 = vpop.f32.mrb[0].mxu0
    %v348 = vadd.f32 %v122, %v347
    %v349 = vpop.f32.mrb[0].mxu0
    %v350 = vadd.f32 %v126, %v349
    %v351 = vpop.f32.mrb[0].mxu0
    %v352 = vadd.f32 %v122, %v351
    %v353 = vpop.f32.mrb[0].mxu0
    %v354 = vadd.f32 %v126, %v353
    %355 = vdwg.mxu0
    %356 = vmatprep.subr.bf16.mxu0 %v223
    %357 = vmatpush1.bf16.msra.mxu0 %v222
    %358 = vmatprep.subr.bf16.mxu0 %v229
    %359 = vmatpush1.bf16.msra.mxu0 %v228
    %360 = vmatprep.subr.bf16.mxu0 %v235
    %361 = vmatpush1.bf16.msra.mxu0 %v234
    %362 = vmatprep.subr.bf16.mxu0 %v241
    %363 = vmatpush1.bf16.msra.mxu0 %v240
    %364 = vmatprep.subr.bf16.mxu0 0
    %365 = vmatpush1.bf16.msra.mxu0 0
    %366 = vmatprep.subr.bf16.mxu0 0
    %367 = vmatpush1.bf16.msra.mxu0 0
    %368 = vmatprep.subr.bf16.mxu0 0
    %369 = vmatpush1.bf16.msra.mxu0 0
    %370 = vmatprep.subr.bf16.mxu0 0
    %371 = vmatpush1.bf16.msra.mxu0 0
    %372 = vmatprep.subr.bf16.mxu0 0
    %373 = vmatpush1.bf16.msra.mxu0 0
    %374 = vmatprep.subr.bf16.mxu0 0
    %375 = vmatpush1.bf16.msra.mxu0 0
    %376 = vmatprep.subr.bf16.mxu0 0
    %377 = vmatpush1.bf16.msra.mxu0 0
    %378 = vmatprep.subr.bf16.mxu0 0
    %379 = vmatpush1.bf16.msra.mxu0 0
    %380 = vmatprep.subr.bf16.mxu0 0
    %381 = vmatpush1.bf16.msra.mxu0 0
    %382 = vmatprep.subr.bf16.mxu0 0
    %383 = vmatpush1.bf16.msra.mxu0 0
    %384 = vmatprep.subr.bf16.mxu0 0
    %385 = vmatpush1.bf16.msra.mxu0 0
    %386 = vmatprep.subr.bf16.mxu0 0
    %387 = vmatpush1.bf16.msra.mxu0 0
    %388 = vmatprep.mubr.bf16.mxu0 0
    %389 = vmatmul.mubr.bf16.gmra.mrb[0].mxu0 %v268
    %v390 = vpop.f32.mrb[0].mxu0
    %v391 = vadd.f32 %v130, %v390
    %v392 = vpop.f32.mrb[0].mxu0
    %v393 = vadd.f32 %v134, %v392
    %v394 = vpop.f32.mrb[0].mxu0
    %v395 = vadd.f32 %v130, %v394
    %v396 = vpop.f32.mrb[0].mxu0
    %v397 = vadd.f32 %v134, %v396
    %398 = vdwg.mxu0
    %v399 = vtanh.pop %v305
    %v400 = vtanh.pop %v307
    %v401 = vtanh.pop %v309
    %v402 = vtanh.pop %v311
    %v403 = vmul.f32 %v399, 0.5
    %v404 = vmul.f32 %v400, 0.5
    %v405 = vmul.f32 %v401, 0.5
    %v406 = vmul.f32 %v402, 0.5
    %v407 = vadd.f32 %v403, 0.5
    %v408 = vadd.f32 %v404, 0.5
    %v409 = vadd.f32 %v405, 0.5
    %v410 = vadd.f32 %v406, 0.5
    %v411 = vtanh.pop %v348
    %v412 = vtanh.pop %v350
    %v413 = vtanh.pop %v352
    %v414 = vtanh.pop %v354
    %v415 = vtanh.pop %v391
    %v416 = vtanh.pop %v393
    %v417 = vtanh.pop %v395
    %v418 = vtanh.pop %v397
    %v419 = vmul.f32 %v415, 0.5
    %v420 = vmul.f32 %v416, 0.5
    %v421 = vmul.f32 %v417, 0.5
    %v422 = vmul.f32 %v418, 0.5
    %v423 = vadd.f32 %v419, 0.5
    %v424 = vadd.f32 %v420, 0.5
    %v425 = vadd.f32 %v421, 0.5
    %v426 = vadd.f32 %v422, 0.5
    %v427 = vmul.f32 %v407, %v411
    %v428 = vmul.f32 %v408, %v412
    %v429 = vmul.f32 %v409, %v413
    %v430 = vmul.f32 %v410, %v414
    %v431 = vtanh.pop %v427
    %v432 = vtanh.pop %v428
    %v433 = vtanh.pop %v429
    %v434 = vtanh.pop %v430
    %v435 = vmul.f32 %v423, %v431
    %v436 = vmul.f32 %v424, %v432
    %v437 = vmul.f32 %v425, %v433
    %v438 = vmul.f32 %v426, %v434
    %v439 = vpack.c.bf16 %v437, %v435
    %v440 = vpack.c.bf16 %v438, %v436
    %v441 = vld [vmem:[#allocation7] sm:$0xff]
    %v442 = vld [vmem:[#allocation7 + $0x8] sm:$0xff]
    %v443 = vld [vmem:[#allocation7 + $0x10] sm:$0xff]
    %v444 = vld [vmem:[#allocation7 + $0x18] sm:$0xff]
    %v445 = vld [vmem:[#allocation7 + $0x20] sm:$0xff]
    %v446 = vld [vmem:[#allocation7 + $0x28] sm:$0xff]
    %v447 = vld [vmem:[#allocation7 + $0x30] sm:$0xff]
    %v448 = vld [vmem:[#allocation7 + $0x38] sm:$0xff]
    %v449 = vld [vmem:[#allocation7 + $0x40] sm:$0xff]
    %v450 = vld [vmem:[#allocation7 + $0x48] sm:$0xff]
    %v451 = vld [vmem:[#allocation7 + $0x50] sm:$0xff]
    %v452 = vld [vmem:[#allocation7 + $0x58] sm:$0xff]
    %v453 = vld [vmem:[#allocation7 + $0x60] sm:$0xff]
    %v454 = vld [vmem:[#allocation7 + $0x68] sm:$0xff]
    %v455 = vld [vmem:[#allocation7 + $0x70] sm:$0xff]
    %v456 = vld [vmem:[#allocation7 + $0x78] sm:$0xff]
    %v457 = vld [vmem:[#allocation7 + $0x80] sm:$0xff]
    %v458 = vld [vmem:[#allocation7 + $0x88] sm:$0xff]
    %v459 = vld [vmem:[#allocation7 + $0x90] sm:$0xff]
    %v460 = vld [vmem:[#allocation7 + $0x98] sm:$0xff]
    %v461 = vld [vmem:[#allocation7 + $0xa0] sm:$0xff]
    %v462 = vld [vmem:[#allocation7 + $0xa8] sm:$0xff]
    %v463 = vld [vmem:[#allocation7 + $0xb0] sm:$0xff]
    %v464 = vld [vmem:[#allocation7 + $0xb8] sm:$0xff]
    %v465 = vld [vmem:[#allocation7 + $0xc0] sm:$0xff]
    %v466 = vld [vmem:[#allocation7 + $0xc8] sm:$0xff]
    %v467 = vld [vmem:[#allocation7 + $0xd0] sm:$0xff]
    %v468 = vld [vmem:[#allocation7 + $0xd8] sm:$0xff]
    %v469 = vld [vmem:[#allocation7 + $0xe0] sm:$0xff]
    %v470 = vld [vmem:[#allocation7 + $0xe8] sm:$0xff]
    %v471 = vld [vmem:[#allocation7 + $0xf0] sm:$0xff]
    %v472 = vld [vmem:[#allocation7 + $0xf8] sm:$0xff]
    %v473 = vld [vmem:[#allocation7 + $0x100] sm:$0xff]
    %v474 = vld [vmem:[#allocation7 + $0x108] sm:$0xff]
    %v475 = vld [vmem:[#allocation7 + $0x110] sm:$0xff]
    %v476 = vld [vmem:[#allocation7 + $0x118] sm:$0xff]
    %v477 = vld [vmem:[#allocation7 + $0x120] sm:$0xff]
    %v478 = vld [vmem:[#allocation7 + $0x128] sm:$0xff]
    %v479 = vld [vmem:[#allocation7 + $0x130] sm:$0xff]
    %v480 = vld [vmem:[#allocation7 + $0x138] sm:$0xff]
    %v481 = vld [vmem:[#allocation7 + $0x140] sm:$0xff]
    %v482 = vld [vmem:[#allocation7 + $0x148] sm:$0xff]
    %v483 = vld [vmem:[#allocation7 + $0x150] sm:$0xff]
    %v484 = vld [vmem:[#allocation7 + $0x158] sm:$0xff]
    %v485 = vld [vmem:[#allocation7 + $0x160] sm:$0xff]
    %v486 = vld [vmem:[#allocation7 + $0x168] sm:$0xff]
    %v487 = vld [vmem:[#allocation7 + $0x170] sm:$0xff]
    %v488 = vld [vmem:[#allocation7 + $0x178] sm:$0xff]
    %v489 = vld [vmem:[#allocation7 + $0x180] sm:$0xff]
    %v490 = vld [vmem:[#allocation7 + $0x188] sm:$0xff]
    %v491 = vld [vmem:[#allocation7 + $0x190] sm:$0xff]
    %v492 = vld [vmem:[#allocation7 + $0x198] sm:$0xff]
    %v493 = vld [vmem:[#allocation7 + $0x1a0] sm:$0xff]
    %v494 = vld [vmem:[#allocation7 + $0x1a8] sm:$0xff]
    %v495 = vld [vmem:[#allocation7 + $0x1b0] sm:$0xff]
    %v496 = vld [vmem:[#allocation7 + $0x1b8] sm:$0xff]
    %v497 = vld [vmem:[#allocation7 + $0x1c0] sm:$0xff]
    %v498 = vld [vmem:[#allocation7 + $0x1c8] sm:$0xff]
    %v499 = vld [vmem:[#allocation7 + $0x1d0] sm:$0xff]
    %v500 = vld [vmem:[#allocation7 + $0x1d8] sm:$0xff]
    %v501 = vld [vmem:[#allocation7 + $0x1e0] sm:$0xff]
    %v502 = vld [vmem:[#allocation7 + $0x1e8] sm:$0xff]
    %v503 = vld [vmem:[#allocation7 + $0x1f0] sm:$0xff]
    %v504 = vld [vmem:[#allocation7 + $0x1f8] sm:$0xff]
    %v505 = vld [vmem:[#allocation7 + $0x200] sm:$0xff]
    %v506 = vld [vmem:[#allocation7 + $0x208] sm:$0xff]
    %v507 = vld [vmem:[#allocation7 + $0x210] sm:$0xff]
    %v508 = vld [vmem:[#allocation7 + $0x218] sm:$0xff]
    %v509 = vld [vmem:[#allocation7 + $0x220] sm:$0xff]
    %v510 = vld [vmem:[#allocation7 + $0x228] sm:$0xff]
    %v511 = vld [vmem:[#allocation7 + $0x230] sm:$0xff]
    %v512 = vld [vmem:[#allocation7 + $0x238] sm:$0xff]
    %v513 = vld [vmem:[#allocation7 + $0x240] sm:$0xff]
    %v514 = vld [vmem:[#allocation7 + $0x248] sm:$0xff]
    %v515 = vld [vmem:[#allocation7 + $0x250] sm:$0xff]
    %v516 = vld [vmem:[#allocation7 + $0x258] sm:$0xff]
    %v517 = vld [vmem:[#allocation7 + $0x260] sm:$0xff]
    %v518 = vld [vmem:[#allocation7 + $0x268] sm:$0xff]
    %v519 = vld [vmem:[#allocation7 + $0x270] sm:$0xff]
    %v520 = vld [vmem:[#allocation7 + $0x278] sm:$0xff]
    %v521 = vld [vmem:[#allocation7 + $0x280] sm:$0xff]
    %v522 = vld [vmem:[#allocation7 + $0x288] sm:$0xff]
    %v523 = vld [vmem:[#allocation7 + $0x290] sm:$0xff]
    %v524 = vld [vmem:[#allocation7 + $0x298] sm:$0xff]
    %v525 = vld [vmem:[#allocation7 + $0x2a0] sm:$0xff]
    %v526 = vld [vmem:[#allocation7 + $0x2a8] sm:$0xff]
    %v527 = vld [vmem:[#allocation7 + $0x2b0] sm:$0xff]
    %v528 = vld [vmem:[#allocation7 + $0x2b8] sm:$0xff]
    %v529 = vld [vmem:[#allocation7 + $0x2c0] sm:$0xff]
    %v530 = vld [vmem:[#allocation7 + $0x2c8] sm:$0xff]
    %v531 = vld [vmem:[#allocation7 + $0x2d0] sm:$0xff]
    %v532 = vld [vmem:[#allocation7 + $0x2d8] sm:$0xff]
    %v533 = vld [vmem:[#allocation7 + $0x2e0] sm:$0xff]
    %v534 = vld [vmem:[#allocation7 + $0x2e8] sm:$0xff]
    %v535 = vld [vmem:[#allocation7 + $0x2f0] sm:$0xff]
    %v536 = vld [vmem:[#allocation7 + $0x2f8] sm:$0xff]
    %v537 = vld [vmem:[%s4] sm:$0x3f]
    %v539 = vlaneseq
    %v540 = vshrl.u32 %v539, 7
    %v541 = vsub.s32 0, %v540
    %v542 = vrot.slane %v537, %v541
    %v543 = vlaneseq
    %v544 = vshrl.u32 %v543, 7
    %v545 = vsub.s32 1, %v544
    %v546 = vrot.slane %v537, %v545
    %v547 = vlaneseq
    %v548 = vshrl.u32 %v547, 7
    %v549 = vsub.s32 2, %v548
    %v550 = vrot.slane %v537, %v549
    %v551 = vlaneseq
    %v552 = vshrl.u32 %v551, 7
    %v553 = vsub.s32 3, %v552
    %v554 = vrot.slane %v537, %v553
    %v555 = vlaneseq
    %v556 = vshrl.u32 %v555, 7
    %v557 = vsub.s32 4, %v556
    %v558 = vrot.slane %v537, %v557
    %v559 = vlaneseq
    %v560 = vshrl.u32 %v559, 7
    %v561 = vsub.s32 5, %v560
    %v562 = vrot.slane %v537, %v561
    %v665 = vunpack.c.l.b16 %v441
    %v666 = vunpack.c.h.b16 %v441
    %v667 = vunpack.c.l.b16 %v442
    %v668 = vunpack.c.h.b16 %v442
    %v669 = vunpack.c.l.b16 %v443
    %v670 = vunpack.c.h.b16 %v443
    %v671 = vunpack.c.l.b16 %v444
    %v672 = vunpack.c.h.b16 %v444
    %v673 = vunpack.c.l.b16 %v445
    %v674 = vunpack.c.h.b16 %v445
    %v675 = vunpack.c.l.b16 %v446
    %v676 = vunpack.c.h.b16 %v446
    %v677 = vunpack.c.l.b16 %v447
    %v678 = vunpack.c.h.b16 %v447
    %v679 = vunpack.c.l.b16 %v448
    %v680 = vunpack.c.h.b16 %v448
    %v681 = vunpack.c.l.b16 %v449
    %v682 = vunpack.c.h.b16 %v449
    %v683 = vunpack.c.l.b16 %v450
    %v684 = vunpack.c.h.b16 %v450
    %v685 = vunpack.c.l.b16 %v451
    %v686 = vunpack.c.h.b16 %v451
    %v687 = vunpack.c.l.b16 %v452
    %v688 = vunpack.c.h.b16 %v452
    %v689 = vunpack.c.l.b16 %v453
    %v690 = vunpack.c.h.b16 %v453
    %v691 = vunpack.c.l.b16 %v454
    %v692 = vunpack.c.h.b16 %v454
    %v693 = vunpack.c.l.b16 %v455
    %v694 = vunpack.c.h.b16 %v455
    %v695 = vunpack.c.l.b16 %v456
    %v696 = vunpack.c.h.b16 %v456
    %v697 = vunpack.c.l.b16 %v457
    %v698 = vunpack.c.h.b16 %v457
    %v699 = vunpack.c.l.b16 %v458
    %v700 = vunpack.c.h.b16 %v458
    %v701 = vunpack.c.l.b16 %v459
    %v702 = vunpack.c.h.b16 %v459
    %v703 = vunpack.c.l.b16 %v460
    %v704 = vunpack.c.h.b16 %v460
    %v705 = vunpack.c.l.b16 %v461
    %v706 = vunpack.c.h.b16 %v461
    %v707 = vunpack.c.l.b16 %v462
    %v708 = vunpack.c.h.b16 %v462
    %v709 = vunpack.c.l.b16 %v463
    %v710 = vunpack.c.h.b16 %v463
    %v711 = vunpack.c.l.b16 %v464
    %v712 = vunpack.c.h.b16 %v464
    %v713 = vunpack.c.l.b16 %v465
    %v714 = vunpack.c.h.b16 %v465
    %v715 = vunpack.c.l.b16 %v466
    %v716 = vunpack.c.h.b16 %v466
    %v717 = vunpack.c.l.b16 %v467
    %v718 = vunpack.c.h.b16 %v467
    %v719 = vunpack.c.l.b16 %v468
    %v720 = vunpack.c.h.b16 %v468
    %v721 = vunpack.c.l.b16 %v469
    %v722 = vunpack.c.h.b16 %v469
    %v723 = vunpack.c.l.b16 %v470
    %v724 = vunpack.c.h.b16 %v470
    %v725 = vunpack.c.l.b16 %v471
    %v726 = vunpack.c.h.b16 %v471
    %v727 = vunpack.c.l.b16 %v472
    %v728 = vunpack.c.h.b16 %v472
    %v729 = vunpack.c.l.b16 %v473
    %v730 = vunpack.c.h.b16 %v473
    %v731 = vunpack.c.l.b16 %v474
    %v732 = vunpack.c.h.b16 %v474
    %v733 = vunpack.c.l.b16 %v475
    %v734 = vunpack.c.h.b16 %v475
    %v735 = vunpack.c.l.b16 %v476
    %v736 = vunpack.c.h.b16 %v476
    %v737 = vunpack.c.l.b16 %v477
    %v738 = vunpack.c.h.b16 %v477
    %v739 = vunpack.c.l.b16 %v478
    %v740 = vunpack.c.h.b16 %v478
    %v741 = vunpack.c.l.b16 %v479
    %v742 = vunpack.c.h.b16 %v479
    %v743 = vunpack.c.l.b16 %v480
    %v744 = vunpack.c.h.b16 %v480
    %v745 = vunpack.c.l.b16 %v481
    %v746 = vunpack.c.h.b16 %v481
    %v747 = vunpack.c.l.b16 %v482
    %v748 = vunpack.c.h.b16 %v482
    %v749 = vunpack.c.l.b16 %v483
    %v750 = vunpack.c.h.b16 %v483
    %v751 = vunpack.c.l.b16 %v484
    %v752 = vunpack.c.h.b16 %v484
    %v753 = vunpack.c.l.b16 %v485
    %v754 = vunpack.c.h.b16 %v485
    %v755 = vunpack.c.l.b16 %v486
    %v756 = vunpack.c.h.b16 %v486
    %v757 = vunpack.c.l.b16 %v487
    %v758 = vunpack.c.h.b16 %v487
    %v759 = vunpack.c.l.b16 %v488
    %v760 = vunpack.c.h.b16 %v488
    %v761 = vunpack.c.l.b16 %v489
    %v762 = vunpack.c.h.b16 %v489
    %v763 = vunpack.c.l.b16 %v490
    %v764 = vunpack.c.h.b16 %v490
    %v765 = vunpack.c.l.b16 %v491
    %v766 = vunpack.c.h.b16 %v491
    %v767 = vunpack.c.l.b16 %v492
    %v768 = vunpack.c.h.b16 %v492
    %v769 = vunpack.c.l.b16 %v493
    %v770 = vunpack.c.h.b16 %v493
    %v771 = vunpack.c.l.b16 %v494
    %v772 = vunpack.c.h.b16 %v494
    %v773 = vunpack.c.l.b16 %v495
    %v774 = vunpack.c.h.b16 %v495
    %v775 = vunpack.c.l.b16 %v496
    %v776 = vunpack.c.h.b16 %v496
    %v777 = vunpack.c.l.b16 %v497
    %v778 = vunpack.c.h.b16 %v497
    %v779 = vunpack.c.l.b16 %v498
    %v780 = vunpack.c.h.b16 %v498
    %v781 = vunpack.c.l.b16 %v499
    %v782 = vunpack.c.h.b16 %v499
    %v783 = vunpack.c.l.b16 %v500
    %v784 = vunpack.c.h.b16 %v500
    %v785 = vunpack.c.l.b16 %v501
    %v786 = vunpack.c.h.b16 %v501
    %v787 = vunpack.c.l.b16 %v502
    %v788 = vunpack.c.h.b16 %v502
    %v789 = vunpack.c.l.b16 %v503
    %v790 = vunpack.c.h.b16 %v503
    %v791 = vunpack.c.l.b16 %v504
    %v792 = vunpack.c.h.b16 %v504
    %v793 = vunpack.c.l.b16 %v505
    %v794 = vunpack.c.h.b16 %v505
    %v795 = vunpack.c.l.b16 %v506
    %v796 = vunpack.c.h.b16 %v506
    %v797 = vunpack.c.l.b16 %v507
    %v798 = vunpack.c.h.b16 %v507
    %v799 = vunpack.c.l.b16 %v508
    %v800 = vunpack.c.h.b16 %v508
    %v801 = vunpack.c.l.b16 %v509
    %v802 = vunpack.c.h.b16 %v509
    %v803 = vunpack.c.l.b16 %v510
    %v804 = vunpack.c.h.b16 %v510
    %v805 = vunpack.c.l.b16 %v511
    %v806 = vunpack.c.h.b16 %v511
    %v807 = vunpack.c.l.b16 %v512
    %v808 = vunpack.c.h.b16 %v512
    %v809 = vunpack.c.l.b16 %v513
    %v810 = vunpack.c.h.b16 %v513
    %v811 = vunpack.c.l.b16 %v514
    %v812 = vunpack.c.h.b16 %v514
    %v813 = vunpack.c.l.b16 %v515
    %v814 = vunpack.c.h.b16 %v515
    %v815 = vunpack.c.l.b16 %v516
    %v816 = vunpack.c.h.b16 %v516
    %v817 = vunpack.c.l.b16 %v517
    %v818 = vunpack.c.h.b16 %v517
    %v819 = vunpack.c.l.b16 %v518
    %v820 = vunpack.c.h.b16 %v518
    %v821 = vunpack.c.l.b16 %v519
    %v822 = vunpack.c.h.b16 %v519
    %v823 = vunpack.c.l.b16 %v520
    %v824 = vunpack.c.h.b16 %v520
    %v825 = vunpack.c.l.b16 %v521
    %v826 = vunpack.c.h.b16 %v521
    %v827 = vunpack.c.l.b16 %v522
    %v828 = vunpack.c.h.b16 %v522
    %v829 = vunpack.c.l.b16 %v523
    %v830 = vunpack.c.h.b16 %v523
    %v831 = vunpack.c.l.b16 %v524
    %v832 = vunpack.c.h.b16 %v524
    %v833 = vunpack.c.l.b16 %v525
    %v834 = vunpack.c.h.b16 %v525
    %v835 = vunpack.c.l.b16 %v526
    %v836 = vunpack.c.h.b16 %v526
    %v837 = vunpack.c.l.b16 %v527
    %v838 = vunpack.c.h.b16 %v527
    %v839 = vunpack.c.l.b16 %v528
    %v840 = vunpack.c.h.b16 %v528
    %v841 = vunpack.c.l.b16 %v529
    %v842 = vunpack.c.h.b16 %v529
    %v843 = vunpack.c.l.b16 %v530
    %v844 = vunpack.c.h.b16 %v530
    %v845 = vunpack.c.l.b16 %v531
    %v846 = vunpack.c.h.b16 %v531
    %v847 = vunpack.c.l.b16 %v532
    %v848 = vunpack.c.h.b16 %v532
    %v849 = vunpack.c.l.b16 %v533
    %v850 = vunpack.c.h.b16 %v533
    %v851 = vunpack.c.l.b16 %v534
    %v852 = vunpack.c.h.b16 %v534
    %v853 = vunpack.c.l.b16 %v535
    %v854 = vunpack.c.h.b16 %v535
    %v855 = vunpack.c.l.b16 %v536
    %v856 = vunpack.c.h.b16 %v536
    %v857 = vpack.c.b16 %v671, %v665
    %v858 = vpack.c.b16 %v672, %v666
    %v859 = vpack.c.b16 %v673, %v667
    %v860 = vpack.c.b16 %v674, %v668
    %v861 = vpack.c.b16 %v675, %v669
    %v862 = vpack.c.b16 %v676, %v670
    %v863 = vpack.c.b16 %v683, %v677
    %v864 = vpack.c.b16 %v684, %v678
    %v865 = vpack.c.b16 %v685, %v679
    %v866 = vpack.c.b16 %v686, %v680
    %v867 = vpack.c.b16 %v687, %v681
    %v868 = vpack.c.b16 %v688, %v682
    %v869 = vpack.c.b16 %v695, %v689
    %v870 = vpack.c.b16 %v696, %v690
    %v871 = vpack.c.b16 %v697, %v691
    %v872 = vpack.c.b16 %v698, %v692
    %v873 = vpack.c.b16 %v699, %v693
    %v874 = vpack.c.b16 %v700, %v694
    %v875 = vpack.c.b16 %v707, %v701
    %v876 = vpack.c.b16 %v708, %v702
    %v877 = vpack.c.b16 %v709, %v703
    %v878 = vpack.c.b16 %v710, %v704
    %v879 = vpack.c.b16 %v711, %v705
    %v880 = vpack.c.b16 %v712, %v706
    %v881 = vpack.c.b16 %v719, %v713
    %v882 = vpack.c.b16 %v720, %v714
    %v883 = vpack.c.b16 %v721, %v715
    %v884 = vpack.c.b16 %v722, %v716
    %v885 = vpack.c.b16 %v723, %v717
    %v886 = vpack.c.b16 %v724, %v718
    %v887 = vpack.c.b16 %v731, %v725
    %v888 = vpack.c.b16 %v732, %v726
    %v889 = vpack.c.b16 %v733, %v727
    %v890 = vpack.c.b16 %v734, %v728
    %v891 = vpack.c.b16 %v735, %v729
    %v892 = vpack.c.b16 %v736, %v730
    %v893 = vpack.c.b16 %v743, %v737
    %v894 = vpack.c.b16 %v744, %v738
    %v895 = vpack.c.b16 %v745, %v739
    %v896 = vpack.c.b16 %v746, %v740
    %v897 = vpack.c.b16 %v747, %v741
    %v898 = vpack.c.b16 %v748, %v742
    %v899 = vpack.c.b16 %v755, %v749
    %v900 = vpack.c.b16 %v756, %v750
    %v901 = vpack.c.b16 %v757, %v751
    %v902 = vpack.c.b16 %v758, %v752
    %v903 = vpack.c.b16 %v759, %v753
    %v904 = vpack.c.b16 %v760, %v754
    %v905 = vpack.c.b16 %v767, %v761
    %v906 = vpack.c.b16 %v768, %v762
    %v907 = vpack.c.b16 %v769, %v763
    %v908 = vpack.c.b16 %v770, %v764
    %v909 = vpack.c.b16 %v771, %v765
    %v910 = vpack.c.b16 %v772, %v766
    %v911 = vpack.c.b16 %v779, %v773
    %v912 = vpack.c.b16 %v780, %v774
    %v913 = vpack.c.b16 %v781, %v775
    %v914 = vpack.c.b16 %v782, %v776
    %v915 = vpack.c.b16 %v783, %v777
    %v916 = vpack.c.b16 %v784, %v778
    %v917 = vpack.c.b16 %v791, %v785
    %v918 = vpack.c.b16 %v792, %v786
    %v919 = vpack.c.b16 %v793, %v787
    %v920 = vpack.c.b16 %v794, %v788
    %v921 = vpack.c.b16 %v795, %v789
    %v922 = vpack.c.b16 %v796, %v790
    %v923 = vpack.c.b16 %v803, %v797
    %v924 = vpack.c.b16 %v804, %v798
    %v925 = vpack.c.b16 %v805, %v799
    %v926 = vpack.c.b16 %v806, %v800
    %v927 = vpack.c.b16 %v807, %v801
    %v928 = vpack.c.b16 %v808, %v802
    %v929 = vpack.c.b16 %v815, %v809
    %v930 = vpack.c.b16 %v816, %v810
    %v931 = vpack.c.b16 %v817, %v811
    %v932 = vpack.c.b16 %v818, %v812
    %v933 = vpack.c.b16 %v819, %v813
    %v934 = vpack.c.b16 %v820, %v814
    %v935 = vpack.c.b16 %v827, %v821
    %v936 = vpack.c.b16 %v828, %v822
    %v937 = vpack.c.b16 %v829, %v823
    %v938 = vpack.c.b16 %v830, %v824
    %v939 = vpack.c.b16 %v831, %v825
    %v940 = vpack.c.b16 %v832, %v826
    %v941 = vpack.c.b16 %v839, %v833
    %v942 = vpack.c.b16 %v840, %v834
    %v943 = vpack.c.b16 %v841, %v835
    %v944 = vpack.c.b16 %v842, %v836
    %v945 = vpack.c.b16 %v843, %v837
    %v946 = vpack.c.b16 %v844, %v838
    %v947 = vpack.c.b16 %v851, %v845
    %v948 = vpack.c.b16 %v852, %v846
    %v949 = vpack.c.b16 %v853, %v847
    %v950 = vpack.c.b16 %v854, %v848
    %v951 = vpack.c.b16 %v855, %v849
    %v952 = vpack.c.b16 %v856, %v850
    %1049 = vmatprep.subr.bf16.mxu0 %v858
    %1050 = vmatpush1.bf16.msra.mxu0 %v857
    %1051 = vmatprep.subr.bf16.mxu0 %v864
    %1052 = vmatpush1.bf16.msra.mxu0 %v863
    %1053 = vmatprep.subr.bf16.mxu0 %v870
    %1054 = vmatpush1.bf16.msra.mxu0 %v869
    %1055 = vmatprep.subr.bf16.mxu0 %v876
    %1056 = vmatpush1.bf16.msra.mxu0 %v875
    %1057 = vmatprep.subr.bf16.mxu0 %v882
    %1058 = vmatpush1.bf16.msra.mxu0 %v881
    %1059 = vmatprep.subr.bf16.mxu0 %v888
    %1060 = vmatpush1.bf16.msra.mxu0 %v887
    %1061 = vmatprep.subr.bf16.mxu0 %v894
    %1062 = vmatpush1.bf16.msra.mxu0 %v893
    %1063 = vmatprep.subr.bf16.mxu0 %v900
    %1064 = vmatpush1.bf16.msra.mxu0 %v899
    %1065 = vmatprep.subr.bf16.mxu0 %v906
    %1066 = vmatpush1.bf16.msra.mxu0 %v905
    %1067 = vmatprep.subr.bf16.mxu0 %v912
    %1068 = vmatpush1.bf16.msra.mxu0 %v911
    %1069 = vmatprep.subr.bf16.mxu0 %v918
    %1070 = vmatpush1.bf16.msra.mxu0 %v917
    %1071 = vmatprep.subr.bf16.mxu0 %v924
    %1072 = vmatpush1.bf16.msra.mxu0 %v923
    %1073 = vmatprep.subr.bf16.mxu0 %v930
    %1074 = vmatpush1.bf16.msra.mxu0 %v929
    %1075 = vmatprep.subr.bf16.mxu0 %v936
    %1076 = vmatpush1.bf16.msra.mxu0 %v935
    %1077 = vmatprep.subr.bf16.mxu0 %v942
    %1078 = vmatpush1.bf16.msra.mxu0 %v941
    %1079 = vmatprep.subr.bf16.mxu0 %v948
    %1080 = vmatpush1.bf16.msra.mxu0 %v947
    %1081 = vmatprep.mubr.bf16.mxu0 %v440
    %1082 = vmatmul.mubr.bf16.gmra.mrb[0].mxu0 %v439
    %v1083 = vpop.f32.mrb[0].mxu0
    %v1084 = vadd.f32 %v542, %v1083
    %v1085 = vpop.f32.mrb[0].mxu0
    %v1086 = vadd.f32 %v546, %v1085
    %v1087 = vpop.f32.mrb[0].mxu0
    %v1088 = vadd.f32 %v542, %v1087
    %v1089 = vpop.f32.mrb[0].mxu0
    %v1090 = vadd.f32 %v546, %v1089
    %1091 = vdwg.mxu0
    %1092 = vmatprep.subr.bf16.mxu0 %v860
    %1093 = vmatpush1.bf16.msra.mxu0 %v859
    %1094 = vmatprep.subr.bf16.mxu0 %v866
    %1095 = vmatpush1.bf16.msra.mxu0 %v865
    %1096 = vmatprep.subr.bf16.mxu0 %v872
    %1097 = vmatpush1.bf16.msra.mxu0 %v871
    %1098 = vmatprep.subr.bf16.mxu0 %v878
    %1099 = vmatpush1.bf16.msra.mxu0 %v877
    %1100 = vmatprep.subr.bf16.mxu0 %v884
    %1101 = vmatpush1.bf16.msra.mxu0 %v883
    %1102 = vmatprep.subr.bf16.mxu0 %v890
    %1103 = vmatpush1.bf16.msra.mxu0 %v889
    %1104 = vmatprep.subr.bf16.mxu0 %v896
    %1105 = vmatpush1.bf16.msra.mxu0 %v895
    %1106 = vmatprep.subr.bf16.mxu0 %v902
    %1107 = vmatpush1.bf16.msra.mxu0 %v901
    %1108 = vmatprep.subr.bf16.mxu0 %v908
    %1109 = vmatpush1.bf16.msra.mxu0 %v907
    %1110 = vmatprep.subr.bf16.mxu0 %v914
    %1111 = vmatpush1.bf16.msra.mxu0 %v913
    %1112 = vmatprep.subr.bf16.mxu0 %v920
    %1113 = vmatpush1.bf16.msra.mxu0 %v919
    %1114 = vmatprep.subr.bf16.mxu0 %v926
    %1115 = vmatpush1.bf16.msra.mxu0 %v925
    %1116 = vmatprep.subr.bf16.mxu0 %v932
    %1117 = vmatpush1.bf16.msra.mxu0 %v931
    %1118 = vmatprep.subr.bf16.mxu0 %v938
    %1119 = vmatpush1.bf16.msra.mxu0 %v937
    %1120 = vmatprep.subr.bf16.mxu0 %v944
    %1121 = vmatpush1.bf16.msra.mxu0 %v943
    %1122 = vmatprep.subr.bf16.mxu0 %v950
    %1123 = vmatpush1.bf16.msra.mxu0 %v949
    %1124 = vmatprep.mubr.bf16.mxu0 %v440
    %1125 = vmatmul.mubr.bf16.gmra.mrb[0].mxu0 %v439
    %v1126 = vpop.f32.mrb[0].mxu0
    %v1127 = vadd.f32 %v550, %v1126
    %v1128 = vpop.f32.mrb[0].mxu0
    %v1129 = vadd.f32 %v554, %v1128
    %v1130 = vpop.f32.mrb[0].mxu0
    %v1131 = vadd.f32 %v550, %v1130
    %v1132 = vpop.f32.mrb[0].mxu0
    %v1133 = vadd.f32 %v554, %v1132
    %1134 = vdwg.mxu0
    %1135 = vmatprep.subr.bf16.mxu0 %v862
    %1136 = vmatpush1.bf16.msra.mxu0 %v861
    %1137 = vmatprep.subr.bf16.mxu0 %v868
    %1138 = vmatpush1.bf16.msra.mxu0 %v867
    %1139 = vmatprep.subr.bf16.mxu0 %v874
    %1140 = vmatpush1.bf16.msra.mxu0 %v873
    %1141 = vmatprep.subr.bf16.mxu0 %v880
    %1142 = vmatpush1.bf16.msra.mxu0 %v879
    %1143 = vmatprep.subr.bf16.mxu0 %v886
    %1144 = vmatpush1.bf16.msra.mxu0 %v885
    %1145 = vmatprep.subr.bf16.mxu0 %v892
    %1146 = vmatpush1.bf16.msra.mxu0 %v891
    %1147 = vmatprep.subr.bf16.mxu0 %v898
    %1148 = vmatpush1.bf16.msra.mxu0 %v897
    %1149 = vmatprep.subr.bf16.mxu0 %v904
    %1150 = vmatpush1.bf16.msra.mxu0 %v903
    %1151 = vmatprep.subr.bf16.mxu0 %v910
    %1152 = vmatpush1.bf16.msra.mxu0 %v909
    %1153 = vmatprep.subr.bf16.mxu0 %v916
    %1154 = vmatpush1.bf16.msra.mxu0 %v915
    %1155 = vmatprep.subr.bf16.mxu0 %v922
    %1156 = vmatpush1.bf16.msra.mxu0 %v921
    %1157 = vmatprep.subr.bf16.mxu0 %v928
    %1158 = vmatpush1.bf16.msra.mxu0 %v927
    %1159 = vmatprep.subr.bf16.mxu0 %v934
    %1160 = vmatpush1.bf16.msra.mxu0 %v933
    %1161 = vmatprep.subr.bf16.mxu0 %v940
    %1162 = vmatpush1.bf16.msra.mxu0 %v939
    %1163 = vmatprep.subr.bf16.mxu0 %v946
    %1164 = vmatpush1.bf16.msra.mxu0 %v945
    %1165 = vmatprep.subr.bf16.mxu0 %v952
    %1166 = vmatpush1.bf16.msra.mxu0 %v951
    %1167 = vmatprep.mubr.bf16.mxu0 %v440
    %1168 = vmatmul.mubr.bf16.gmra.mrb[0].mxu0 %v439
    %v1169 = vpop.f32.mrb[0].mxu0
    %v1170 = vadd.f32 %v558, %v1169
    %v1171 = vpop.f32.mrb[0].mxu0
    %v1172 = vadd.f32 %v562, %v1171
    %v1173 = vpop.f32.mrb[0].mxu0
    %v1174 = vadd.f32 %v558, %v1173
    %v1175 = vpop.f32.mrb[0].mxu0
    %v1176 = vadd.f32 %v562, %v1175
    %1177 = vdwg.mxu0
    %v1178 = vtanh.pop %v1084
    %v1179 = vtanh.pop %v1086
    %v1180 = vtanh.pop %v1088
    %v1181 = vtanh.pop %v1090
    %v1182 = vmul.f32 %v1178, 0.5
    %v1183 = vmul.f32 %v1179, 0.5
    %v1184 = vmul.f32 %v1180, 0.5
    %v1185 = vmul.f32 %v1181, 0.5
    %v1186 = vadd.f32 %v1182, 0.5
    %v1187 = vadd.f32 %v1183, 0.5
    %v1188 = vadd.f32 %v1184, 0.5
    %v1189 = vadd.f32 %v1185, 0.5
    %v1190 = vtanh.pop %v1127
    %v1191 = vtanh.pop %v1129
    %v1192 = vtanh.pop %v1131
    %v1193 = vtanh.pop %v1133
    %v1194 = vtanh.pop %v1170
    %v1195 = vtanh.pop %v1172
    %v1196 = vtanh.pop %v1174
    %v1197 = vtanh.pop %v1176
    %v1198 = vmul.f32 %v1194, 0.5
    %v1199 = vmul.f32 %v1195, 0.5
    %v1200 = vmul.f32 %v1196, 0.5
    %v1201 = vmul.f32 %v1197, 0.5
    %v1202 = vadd.f32 %v1198, 0.5
    %v1203 = vadd.f32 %v1199, 0.5
    %v1204 = vadd.f32 %v1200, 0.5
    %v1205 = vadd.f32 %v1201, 0.5
    %v1206 = vmul.f32 %v1186, %v1190
    %v1207 = vmul.f32 %v1187, %v1191
    %v1208 = vmul.f32 %v1188, %v1192
    %v1209 = vmul.f32 %v1189, %v1193
    %v1210 = vtanh.pop %v1206
    %v1211 = vtanh.pop %v1207
    %v1212 = vtanh.pop %v1208
    %v1213 = vtanh.pop %v1209
    %v1214 = vmul.f32 %v1202, %v1210
    %v1215 = vmul.f32 %v1203, %v1211
    %v1216 = vmul.f32 %v1204, %v1212
    %v1217 = vmul.f32 %v1205, %v1213
    %v1218 = vtanh.pop %v1214
    %v1219 = vtanh.pop %v1215
    %v1220 = vtanh.pop %v1216
    %v1221 = vtanh.pop %v1217
    %v1222 = vpack.c.bf16 %v1220, %v1218
    %v1223 = vpack.c.bf16 %v1221, %v1219
    %v1224 = vld [vmem:[#allocation8] sm:$0xf]
    %v1225 = vld [vmem:[#allocation8 + $0x4] sm:$0xf]
    %v1226 = vld [vmem:[#allocation8 + $0x8] sm:$0xf]
    %v1227 = vld [vmem:[#allocation8 + $0xc] sm:$0xf]
    %v1228 = vld [vmem:[#allocation8 + $0x10] sm:$0xf]
    %v1229 = vld [vmem:[#allocation8 + $0x14] sm:$0xf]
    %v1230 = vld [vmem:[#allocation8 + $0x18] sm:$0xf]
    %v1231 = vld [vmem:[#allocation8 + $0x1c] sm:$0xf]
    %v1232 = vld [vmem:[#allocation8 + $0x20] sm:$0xf]
    %v1233 = vld [vmem:[#allocation8 + $0x24] sm:$0xf]
    %v1234 = vld [vmem:[#allocation8 + $0x28] sm:$0xf]
    %v1235 = vld [vmem:[#allocation8 + $0x2c] sm:$0xf]
    %v1236 = vld [vmem:[#allocation8 + $0x30] sm:$0xf]
    %v1237 = vld [vmem:[#allocation8 + $0x34] sm:$0xf]
    %v1238 = vld [vmem:[#allocation8 + $0x38] sm:$0xf]
    %v1239 = vld [vmem:[#allocation8 + $0x3c] sm:$0xf]
    %v1240 = vld [vmem:[#allocation8 + $0x40] sm:$0xf]
    %v1241 = vld [vmem:[#allocation8 + $0x44] sm:$0xf]
    %v1242 = vld [vmem:[#allocation8 + $0x48] sm:$0xf]
    %v1243 = vld [vmem:[#allocation8 + $0x4c] sm:$0xf]
    %v1244 = vld [vmem:[#allocation8 + $0x50] sm:$0xf]
    %v1245 = vld [vmem:[#allocation8 + $0x54] sm:$0xf]
    %v1246 = vld [vmem:[#allocation8 + $0x58] sm:$0xf]
    %v1247 = vld [vmem:[#allocation8 + $0x5c] sm:$0xf]
    %v1248 = vld [vmem:[#allocation8 + $0x60] sm:$0xf]
    %v1249 = vld [vmem:[#allocation8 + $0x64] sm:$0xf]
    %v1250 = vld [vmem:[#allocation8 + $0x68] sm:$0xf]
    %v1251 = vld [vmem:[#allocation8 + $0x6c] sm:$0xf]
    %v1252 = vld [vmem:[#allocation8 + $0x70] sm:$0xf]
    %v1253 = vld [vmem:[#allocation8 + $0x74] sm:$0xf]
    %v1254 = vld [vmem:[#allocation8 + $0x78] sm:$0xf]
    %v1255 = vld [vmem:[#allocation8 + $0x7c] sm:$0xf]
    %v1256 = vld [vmem:[%s6] sm:$0x1]
    %v1258 = vlaneseq
    %v1259 = vshrl.u32 %v1258, 7
    %v1260 = vsub.s32 0, %v1259
    %v1261 = vrot.slane %v1256, %v1260
    %v1295 = vunpack.c.l.b16 %v1224
    %v1296 = vunpack.c.l.b16 %v1225
    %v1297 = vunpack.c.l.b16 %v1226
    %v1298 = vunpack.c.l.b16 %v1227
    %v1299 = vunpack.c.l.b16 %v1228
    %v1300 = vunpack.c.l.b16 %v1229
    %v1301 = vunpack.c.l.b16 %v1230
    %v1302 = vunpack.c.l.b16 %v1231
    %v1303 = vunpack.c.l.b16 %v1232
    %v1304 = vunpack.c.l.b16 %v1233
    %v1305 = vunpack.c.l.b16 %v1234
    %v1306 = vunpack.c.l.b16 %v1235
    %v1307 = vunpack.c.l.b16 %v1236
    %v1308 = vunpack.c.l.b16 %v1237
    %v1309 = vunpack.c.l.b16 %v1238
    %v1310 = vunpack.c.l.b16 %v1239
    %v1311 = vunpack.c.l.b16 %v1240
    %v1312 = vunpack.c.l.b16 %v1241
    %v1313 = vunpack.c.l.b16 %v1242
    %v1314 = vunpack.c.l.b16 %v1243
    %v1315 = vunpack.c.l.b16 %v1244
    %v1316 = vunpack.c.l.b16 %v1245
    %v1317 = vunpack.c.l.b16 %v1246
    %v1318 = vunpack.c.l.b16 %v1247
    %v1319 = vunpack.c.l.b16 %v1248
    %v1320 = vunpack.c.l.b16 %v1249
    %v1321 = vunpack.c.l.b16 %v1250
    %v1322 = vunpack.c.l.b16 %v1251
    %v1323 = vunpack.c.l.b16 %v1252
    %v1324 = vunpack.c.l.b16 %v1253
    %v1325 = vunpack.c.l.b16 %v1254
    %v1326 = vunpack.c.l.b16 %v1255
    %v1327 = vpack.c.b16 %v1296, %v1295
    %v1328 = vpack.c.b16 %v1298, %v1297
    %v1329 = vpack.c.b16 %v1300, %v1299
    %v1330 = vpack.c.b16 %v1302, %v1301
    %v1331 = vpack.c.b16 %v1304, %v1303
    %v1332 = vpack.c.b16 %v1306, %v1305
    %v1333 = vpack.c.b16 %v1308, %v1307
    %v1334 = vpack.c.b16 %v1310, %v1309
    %v1335 = vpack.c.b16 %v1312, %v1311
    %v1336 = vpack.c.b16 %v1314, %v1313
    %v1337 = vpack.c.b16 %v1316, %v1315
    %v1338 = vpack.c.b16 %v1318, %v1317
    %v1339 = vpack.c.b16 %v1320, %v1319
    %v1340 = vpack.c.b16 %v1322, %v1321
    %v1341 = vpack.c.b16 %v1324, %v1323
    %v1342 = vpack.c.b16 %v1326, %v1325
    %1359 = vmatprep.subr.bf16.mxu0 0
    %1360 = vmatpush1.bf16.msra.mxu0 %v1327
    %1361 = vmatprep.subr.bf16.mxu0 0
    %1362 = vmatpush1.bf16.msra.mxu0 %v1328
    %1363 = vmatprep.subr.bf16.mxu0 0
    %1364 = vmatpush1.bf16.msra.mxu0 %v1329
    %1365 = vmatprep.subr.bf16.mxu0 0
    %1366 = vmatpush1.bf16.msra.mxu0 %v1330
    %1367 = vmatprep.subr.bf16.mxu0 0
    %1368 = vmatpush1.bf16.msra.mxu0 %v1331
    %1369 = vmatprep.subr.bf16.mxu0 0
    %1370 = vmatpush1.bf16.msra.mxu0 %v1332
    %1371 = vmatprep.subr.bf16.mxu0 0
    %1372 = vmatpush1.bf16.msra.mxu0 %v1333
    %1373 = vmatprep.subr.bf16.mxu0 0
    %1374 = vmatpush1.bf16.msra.mxu0 %v1334
    %1375 = vmatprep.subr.bf16.mxu0 0
    %1376 = vmatpush1.bf16.msra.mxu0 %v1335
    %1377 = vmatprep.subr.bf16.mxu0 0
    %1378 = vmatpush1.bf16.msra.mxu0 %v1336
    %1379 = vmatprep.subr.bf16.mxu0 0
    %1380 = vmatpush1.bf16.msra.mxu0 %v1337
    %1381 = vmatprep.subr.bf16.mxu0 0
    %1382 = vmatpush1.bf16.msra.mxu0 %v1338
    %1383 = vmatprep.subr.bf16.mxu0 0
    %1384 = vmatpush1.bf16.msra.mxu0 %v1339
    %1385 = vmatprep.subr.bf16.mxu0 0
    %1386 = vmatpush1.bf16.msra.mxu0 %v1340
    %1387 = vmatprep.subr.bf16.mxu0 0
    %1388 = vmatpush1.bf16.msra.mxu0 %v1341
    %1389 = vmatprep.subr.bf16.mxu0 0
    %1390 = vmatpush1.bf16.msra.mxu0 %v1342
    %1391 = vmatprep.mubr.bf16.mxu0 %v1223
    %1392 = vmatmul.mubr.bf16.gmra.mrb[0].mxu0 %v1222
    %v1393 = vpop.f32.mrb[0].mxu0
    %v1394 = vadd.f32 %v1261, %v1393
    %v1395 = vpop.f32.mrb[0].mxu0
    %v1396 = vpop.f32.mrb[0].mxu0
    %v1397 = vadd.f32 %v1261, %v1396
    %v1398 = vpop.f32.mrb[0].mxu0
    %1399 = vdwg.mxu0
    %v1400 = vtanh.pop %v1394
    %v1401 = vtanh.pop %v1397
    %v1402 = vpack.c.bf16 %v1401, %v1400
    %v1404 = vunpack.c.l.b16 %v1402
    %v1405 = vunpack.c.h.b16 %v1402
    %v1406 = vpack.c.b16 %v1404, %v1404
    %v1407 = vpack.c.b16 %v1405, %v1405
    %1410 = vst [vmem:[#allocation10] sm:$0xf] %v1406
    %1411 = vst [vmem:[#allocation10 + $0x4] sm:$0xf] %v1407
    // Predicated region
    $region46: #{tpu_custom_call.1} parent=1 // pred_check
      _
    $region47: #{tpu_custom_call.1} parent=1 // pred_check_branch
      %1413 = sbr.rel (0) target = $region49
    $region48: #{tpu_custom_call.1} parent=1 // pred_region
      %s1415 = ssub.s32 128, 128
      %1416 = vsyncadd [#allocation4], %s1415
      %s1417 = sshll.u32 [#allocation10], 4
      %s1418 = int_to_ptr.vmem [resolvable:$true] %s1417
      %1423 = dma.vmem_to_hbm [thread:$0]  %s1418, 128, %s7, [#allocation4], 64, 64, 4
    $region49: #{tpu_custom_call.1} parent=1 // pred_fallthru
      _
    // Predicated region
    $region50: #{tpu_custom_call.1} parent=1 // pred_check
      _
    $region51: #{tpu_custom_call.1} parent=1 // pred_check_branch
      %1425 = sbr.rel (0) target = $region53
    $region52: #{tpu_custom_call.1} parent=1 // pred_region
      %1426 = dma.done [#allocation4], 128
    $region53: #{tpu_custom_call.1} parent=1 // pred_fallthru
      _
    %1427 = vsyncpa [#allocation3], 1
    %1428 = vsyncpa [#allocation6], 1
    %1429 = vsyncpa [#allocation9], 1
    %1430 = vsyncpa [#allocation4], 1

</llo_original>
